<compile_context>
chip_gen: v6e
topology: v6e:2x2x1
jax: 0.10.0
libtpu: 0.0.40
codegen_flags: <defaults>
</compile_context>

<pallas_src>
from functools import partial

import jax
import jax.numpy as jnp
from jax.experimental import pallas as pl
from jax.experimental.pallas import tpu as pltpu


def _ce_partial_kernel(logits_ref, targets_ref, loss_sum_ref, count_ref):
    # logits_ref / targets_ref : [T, C, TB]   (batch tile on the lane axis)
    # loss_sum_ref / count_ref : [1, T, 1]    per-block partials
    x = logits_ref[...].astype(jnp.float32)
    t = targets_ref[...].astype(jnp.float32)

    # NaN handling: a (task, sample) column is valid iff no class entry is NaN.
    # Single mask reused for both cleaning and validity (low vreg pressure).
    is_nan = jnp.isnan(t)                                     # [T, C, TB]
    t_clean = jnp.where(is_nan, 0.0, t)                       # [T, C, TB]
    invalid = jnp.max(is_nan.astype(jnp.float32), axis=1)     # [T, TB]
    valid_f = 1.0 - invalid                                   # [T, TB]

    # Numerically stable log_softmax over the class (sublane) axis.
    m = jnp.max(x, axis=1, keepdims=True)                     # [T, 1, TB]
    shifted = x - m
    lse = jnp.log(jnp.sum(jnp.exp(shifted), axis=1, keepdims=True))
    log_probs = shifted - lse                                 # [T, C, TB]

    loss = -jnp.sum(t_clean * log_probs, axis=1)              # [T, TB]
    masked_loss = loss * valid_f                              # [T, TB]

    # Per-block partial reductions over the batch (lane) axis.
    loss_sum_ref[...] = jnp.sum(masked_loss, axis=1, keepdims=True)[None]  # [1,T,1]
    count_ref[...] = jnp.sum(valid_f, axis=1, keepdims=True)[None]         # [1,T,1]


def _pick_batch_tile(batch, bytes_per_col):
    # Aim for ~1 MiB of payload per input block.  With 2 inputs, double
    # buffering and sublane padding this stays well under the 32 MiB scoped
    # VMEM default on every chip (including v7x's 64 MiB total VMEM).
    tb = max(128, (1 << 20) // max(bytes_per_col, 1))
    tb = (tb // 128) * 128
    b_ceil = pl.cdiv(batch, 128) * 128
    return min(tb, b_ceil)


@partial(jax.jit, static_argnames=("num_classes", "num_tasks"))
def combined_ce_loss(logits, targets, num_classes, num_tasks, weights=None):
    """JAX/Pallas equivalent of CombinedCELoss.forward.

    Args:
      logits:  [B, num_tasks * num_classes] float (may be bf16 or f32)
      targets: [B, num_tasks * num_classes] float (may contain NaN)
      weights: optional [num_tasks] un-normalized per-task weights
    Returns:
      (total_loss scalar float32, dim_losses [num_tasks] float32)
    """
    B = logits.shape[0]
    T, C = num_tasks, num_classes
    if weights is None:
        weights = jnp.ones((T,), jnp.float32)
    weights = weights.astype(jnp.float32)
    weights = weights / jnp.sum(weights)   # buffer normalization from __init__

    # [B, T*C] -> [T, C, B]: put batch on the lane axis.  Inputs keep their
    # original dtype through the DMA; the kernel casts to f32 internally.
    # TODO(synk): if num_classes >= 128 a C-on-lanes layout (C padded to 128)
    # would be preferable; not needed for this module's small class counts.
    l3 = jnp.transpose(logits.reshape(B, T, C), (1, 2, 0))
    t3 = jnp.transpose(targets.reshape(B, T, C), (1, 2, 0))

    TB = _pick_batch_tile(B, T * C * logits.dtype.itemsize)
    B_pad = pl.cdiv(B, TB) * TB
    num_blocks = B_pad // TB
    if B_pad != B:
        pad = B_pad - B
        l3 = jnp.pad(l3, ((0, 0), (0, 0), (0, pad)))
        # Padded samples get NaN targets -> masked out inside the kernel.
        t3 = jnp.pad(t3, ((0, 0), (0, 0), (0, pad)),
                     constant_values=jnp.nan)

    loss_sums, counts = pl.pallas_call(
        _ce_partial_kernel,
        out_shape=(
            jax.ShapeDtypeStruct((num_blocks, T, 1), jnp.float32),
            jax.ShapeDtypeStruct((num_blocks, T, 1), jnp.float32),
        ),
        grid_spec=pltpu.PrefetchScalarGridSpec(
            num_scalar_prefetch=0,
            grid=(num_blocks,),
            in_specs=[
                pl.BlockSpec((T, C, TB), lambda b: (0, 0, b)),
                pl.BlockSpec((T, C, TB), lambda b: (0, 0, b)),
            ],
            out_specs=(
                pl.BlockSpec((1, T, 1), lambda b: (b, 0, 0)),
                pl.BlockSpec((1, T, 1), lambda b: (b, 0, 0)),
            ),
        ),
        compiler_params=pltpu.CompilerParams(
            dimension_semantics=("parallel",),
        ),
    )(l3, t3)

    # Tiny epilogue (O(num_blocks * T)): combine partials exactly like the
    # PyTorch module.
    loss_sum = jnp.sum(loss_sums[:, :, 0], axis=0)            # [T]
    count = jnp.sum(counts[:, :, 0], axis=0)                  # [T]
    dim_losses = loss_sum / jnp.maximum(count, 1.0)           # clamp(min=1)
    valid_dims = (count > 0.0).astype(jnp.float32)            # mask.any(dim=0)
    w = weights * valid_dims
    w_sum = jnp.maximum(jnp.sum(w), 1e-8)                     # clamp(min=1e-8)
    total = jnp.sum(dim_losses * w) / w_sum
    return total, dim_losses


def _reference(logits, targets, num_classes, num_tasks, weights=None):
    """Pure-JAX reference mirroring the PyTorch module exactly."""
    B = logits.shape[0]
    if weights is None:
        weights = jnp.ones((num_tasks,), dtype=jnp.float32)
    weights = weights.astype(jnp.float32)
    weights = weights / jnp.sum(weights)
    l = logits.reshape(B, num_tasks, num_classes).astype(jnp.float32)
    t = targets.reshape(B, num_tasks, num_classes).astype(jnp.float32)
    mask = ~jnp.any(jnp.isnan(t), axis=-1)
    valid_samples = jnp.maximum(jnp.sum(mask, axis=0), 1).astype(jnp.float32)
    log_probs = jax.nn.log_softmax(l, axis=-1)
    t = jnp.nan_to_num(t, nan=0.0)
    loss = -jnp.sum(t * log_probs, axis=-1)
    masked_loss = loss * mask.astype(jnp.float32)
    dim_losses = jnp.sum(masked_loss, axis=0) / valid_samples
    valid_dims = jnp.any(mask, axis=0)
    w = weights * valid_dims.astype(jnp.float32)
    w_sum = jnp.maximum(jnp.sum(w), 1e-8)
    total = jnp.sum(dim_losses * w) / w_sum
    return total, dim_losses


if __name__ == "__main__":
    num_classes = 4
    num_tasks = 2
    batch = 8

    key = jax.random.PRNGKey(0)
    k1, k2 = jax.random.split(key)
    logits = jax.random.normal(k1, (batch, num_tasks * num_classes), jnp.float32)
    # Targets: soft class-probability vectors per task.
    raw = jax.random.normal(k2, (batch, num_tasks, num_classes), jnp.float32)
    targets = jax.nn.softmax(raw, axis=-1).reshape(batch, num_tasks * num_classes)
    # Inject NaNs: sample 1 / task 1 and sample 3 / task 0 are missing.
    targets = targets.at[1, num_classes:2 * num_classes].set(jnp.nan)
    targets = targets.at[3, 0:num_classes].set(jnp.nan)

    total, dim_losses = combined_ce_loss(logits, targets, num_classes, num_tasks)
    total = jax.block_until_ready(total)
    dim_losses = jax.block_until_ready(dim_losses)

    ref_total, ref_dim = _reference(logits, targets, num_classes, num_tasks)
    assert jnp.allclose(total, ref_total, atol=1e-5, rtol=1e-5), (total, ref_total)
    assert jnp.allclose(dim_losses, ref_dim, atol=1e-5, rtol=1e-5), (dim_losses, ref_dim)

    # Second check: explicit (un-normalized) per-task weights.
    wts = jnp.array([2.0, 1.0], jnp.float32)
    total_w, dim_w = combined_ce_loss(
        logits, targets, num_classes, num_tasks, weights=wts)
    total_w = jax.block_until_ready(total_w)
    dim_w = jax.block_until_ready(dim_w)
    ref_total_w, ref_dim_w = _reference(
        logits, targets, num_classes, num_tasks, weights=wts)
    assert jnp.allclose(total_w, ref_total_w, atol=1e-5, rtol=1e-5)
    assert jnp.allclose(dim_w, ref_dim_w, atol=1e-5, rtol=1e-5)

    print("KERNEL_OK")
</pallas_src>

<mosaic_0001>
module attributes {stable_mosaic.version = 11 : i64} {
  func.func @_ce_partial_kernel(%arg0: i32, %arg1: memref<2x4x128xf32, #tpu.memory_space<vmem>>, %arg2: memref<2x4x128xf32, #tpu.memory_space<vmem>>, %arg3: memref<1x2x1xf32, #tpu.memory_space<vmem>>, %arg4: memref<1x2x1xf32, #tpu.memory_space<vmem>>) attributes {dimension_semantics = [#tpu.dimension_semantics<parallel>], iteration_bounds = array<i64: 1>, scalar_prefetch = 0 : i64, scratch_operands = 0 : i64, tpu.core_type = #tpu.core_type<tc>, window_params = [{transform_indices = @transform_0, window_bounds = array<i64: 2, 4, 128>}, {transform_indices = @transform_1, window_bounds = array<i64: 2, 4, 128>}, {transform_indices = @transform_2, window_bounds = array<i64: 1, 2, 1>}, {transform_indices = @transform_3, window_bounds = array<i64: 1, 2, 1>}]} {
    %c0 = arith.constant 0 : index
    %c0_0 = arith.constant 0 : index
    %c0_1 = arith.constant 0 : index
    %0 = vector.load %arg1[%c0, %c0_0, %c0_1] : memref<2x4x128xf32, #tpu.memory_space<vmem>>, vector<2x4x128xf32>
    %c0_2 = arith.constant 0 : index
    %c0_3 = arith.constant 0 : index
    %c0_4 = arith.constant 0 : index
    %1 = vector.load %arg2[%c0_2, %c0_3, %c0_4] : memref<2x4x128xf32, #tpu.memory_space<vmem>>, vector<2x4x128xf32>
    %2 = arith.cmpf one, %1, %1 : vector<2x4x128xf32>
    %cst = arith.constant 0.000000e+00 : f32
    %3 = vector.broadcast %cst : f32 to vector<2x4x128xf32>
    %4 = arith.select %2, %3, %1 : vector<2x4x128xi1>, vector<2x4x128xf32>
    %5 = arith.extui %2 : vector<2x4x128xi1> to vector<2x4x128xi32>
    %6 = arith.sitofp %5 : vector<2x4x128xi32> to vector<2x4x128xf32>
    %cst_5 = arith.constant dense<0xFF800000> : vector<2x128xf32>
    %7 = vector.multi_reduction <maximumf>, %6, %cst_5 [1] : vector<2x4x128xf32> to vector<2x128xf32>
    %cst_6 = arith.constant 1.000000e+00 : f32
    %8 = vector.broadcast %cst_6 : f32 to vector<2x128xf32>
    %9 = arith.subf %8, %7 : vector<2x128xf32>
    %cst_7 = arith.constant dense<0xFF800000> : vector<2x128xf32>
    %10 = vector.multi_reduction <maximumf>, %0, %cst_7 [1] : vector<2x4x128xf32> to vector<2x128xf32>
    %11 = vector.shape_cast %10 : vector<2x128xf32> to vector<2x1x128xf32>
    %12 = vector.broadcast %11 : vector<2x1x128xf32> to vector<2x4x128xf32>
    %13 = arith.subf %0, %12 : vector<2x4x128xf32>
    %14 = math.exp %13 : vector<2x4x128xf32>
    %cst_8 = arith.constant dense<0.000000e+00> : vector<2x128xf32>
    %15 = vector.multi_reduction <add>, %14, %cst_8 [1] : vector<2x4x128xf32> to vector<2x128xf32>
    %16 = vector.shape_cast %15 : vector<2x128xf32> to vector<2x1x128xf32>
    %17 = math.log %16 : vector<2x1x128xf32>
    %18 = vector.broadcast %17 : vector<2x1x128xf32> to vector<2x4x128xf32>
    %19 = arith.subf %13, %18 : vector<2x4x128xf32>
    %20 = arith.mulf %4, %19 : vector<2x4x128xf32>
    %cst_9 = arith.constant dense<0.000000e+00> : vector<2x128xf32>
    %21 = vector.multi_reduction <add>, %20, %cst_9 [1] : vector<2x4x128xf32> to vector<2x128xf32>
    %cst_10 = arith.constant 0.000000e+00 : f32
    %22 = vector.broadcast %cst_10 : f32 to vector<2x128xf32>
    %23 = arith.subf %22, %21 : vector<2x128xf32>
    %24 = arith.mulf %23, %9 : vector<2x128xf32>
    %cst_11 = arith.constant dense<0.000000e+00> : vector<2xf32>
    %25 = vector.multi_reduction <add>, %24, %cst_11 [1] : vector<2x128xf32> to vector<2xf32>
    %26 = vector.shape_cast %25 : vector<2xf32> to vector<2x1xf32>
    %27 = vector.shape_cast %26 : vector<2x1xf32> to vector<1x2x1xf32>
    %c0_12 = arith.constant 0 : index
    %c0_13 = arith.constant 0 : index
    %c0_14 = arith.constant 0 : index
    %28 = vector.load %arg3[%c0_12, %c0_13, %c0_14] : memref<1x2x1xf32, #tpu.memory_space<vmem>>, vector<1x2x1xf32>
    tpu.vector_store %arg3[%c0_12, %c0_13, %c0_14], %27 {strides = array<i32>} : memref<1x2x1xf32, #tpu.memory_space<vmem>>, vector<1x2x1xf32>,
    %cst_15 = arith.constant dense<0.000000e+00> : vector<2xf32>
    %29 = vector.multi_reduction <add>, %9, %cst_15 [1] : vector<2x128xf32> to vector<2xf32>
    %30 = vector.shape_cast %29 : vector<2xf32> to vector<2x1xf32>
    %31 = vector.shape_cast %30 : vector<2x1xf32> to vector<1x2x1xf32>
    %c0_16 = arith.constant 0 : index
    %c0_17 = arith.constant 0 : index
    %c0_18 = arith.constant 0 : index
    %32 = vector.load %arg4[%c0_16, %c0_17, %c0_18] : memref<1x2x1xf32, #tpu.memory_space<vmem>>, vector<1x2x1xf32>
    tpu.vector_store %arg4[%c0_16, %c0_17, %c0_18], %31 {strides = array<i32>} : memref<1x2x1xf32, #tpu.memory_space<vmem>>, vector<1x2x1xf32>,
    return
  }
  func.func @transform_0(%arg0: i32) -> (i32, i32, i32) {
    %c0_i32 = arith.constant 0 : i32
    %c0_i32_0 = arith.constant 0 : i32
    %c0_i32_1 = arith.constant 0 : i32
    return %c0_i32, %c0_i32_0, %arg0 : i32, i32, i32
  }
  func.func @transform_1(%arg0: i32) -> (i32, i32, i32) {
    %c0_i32 = arith.constant 0 : i32
    %c0_i32_0 = arith.constant 0 : i32
    %c0_i32_1 = arith.constant 0 : i32
    return %c0_i32, %c0_i32_0, %arg0 : i32, i32, i32
  }
  func.func @transform_2(%arg0: i32) -> (i32, i32, i32) {
    %c0_i32 = arith.constant 0 : i32
    %c0_i32_0 = arith.constant 0 : i32
    %c0_i32_1 = arith.constant 0 : i32
    return %arg0, %c0_i32, %c0_i32_0 : i32, i32, i32
  }
  func.func @transform_3(%arg0: i32) -> (i32, i32, i32) {
    %c0_i32 = arith.constant 0 : i32
    %c0_i32_0 = arith.constant 0 : i32
    %c0_i32_1 = arith.constant 0 : i32
    return %arg0, %c0_i32, %c0_i32_0 : i32, i32, i32
  }
}

</mosaic_0001>

<llo_original>
// kernel: combined_ce_loss.1
$region0: #{combined_ce_loss.1}
  #allocation0 [shape = 'u32[]', space=smem, size = 0x4, offset = 0x4, fixed_abs, tag = 'smem constant byte address 0x4 - core index']
  #allocation1 [shape = 'u32[144,128]{1,0:T(1,128)}', space=vmem, size = 0x12000, scoped, tag = 'internal scratch']
  %s0 = inlined_call_operand.vmem [shape: f32[2,4,128], index: 0, kind: input, shape index: {}]
  %s1 = inlined_call_operand.vmem [shape: f32[2,4,128], index: 1, kind: input, shape index: {}]
  %s2 = inlined_call_operand.vmem [shape: f32[1,2,1], index: 2, kind: output, shape index: {0}]
  %s3 = inlined_call_operand.vmem [shape: f32[1,2,1], index: 3, kind: output, shape index: {1}]
  %4 = xla_tuple %s2, %s3
  %s5 = sld [smem:[#allocation0]]
  $region26: #{combined_ce_loss.1} parent=0
    _
  %s7 = ssub.s32 1, %s5
  %s8 = scalar_select 0, %s7, %s5
  // Predicated region
  $region2: #{combined_ce_loss.1} parent=0 // pred_check
    _
  $region3: #{combined_ce_loss.1} parent=0 // pred_check_branch
    %10 = sbr.rel (0) target = $region5
  $region4: #{combined_ce_loss.1} parent=0 // pred_region
    _
  $region5: #{combined_ce_loss.1} parent=0 // pred_fallthru
    _
  // Predicated region
  $region6: #{combined_ce_loss.1} parent=0 // pred_check
    _
  $region7: #{combined_ce_loss.1} parent=0 // pred_check_branch
    %12 = sbr.rel (0) target = $region9
  $region8: #{combined_ce_loss.1} parent=0 // pred_region
    _
  $region9: #{combined_ce_loss.1} parent=0 // pred_fallthru
    _
  %v13 = vld [vmem:[%s0] sm:$0xf]
  %v14 = vld [vmem:[%s0 + $0x4] sm:$0xf]
  %v15 = vld [vmem:[%s1] sm:$0xf]
  %v16 = vld [vmem:[%s1 + $0x4] sm:$0xf]
  %vm17 = vcmp.ne.f32.partialorder %v15, %v15
  %vm18 = vcmp.ne.f32.partialorder %v16, %v16
  %v19 = vsel %vm17, 0.0, %v15
  %v20 = vsel %vm18, 0.0, %v16
  %v21 = vsel %vm17, 1, 0
  %v22 = vsel %vm18, 1, 0
  %v23 = vcvt.s32.f32 %v21
  %v24 = vcvt.s32.f32 %v22
  %vm25 = vcmask 1043456
  %v26 = vsel %vm25, %v23, -inf
  %v27 = vrot.slane %v26, 4
  %v28 = vmax.f32 %v26, %v27
  %v29 = vrot.slane %v28, 2
  %v30 = vmax.f32 %v28, %v29
  %v31 = vrot.slane %v30, 1
  %v32 = vmax.f32 %v30, %v31
  %v33 = vsel %vm25, %v24, -inf
  %v34 = vrot.slane %v33, 4
  %v35 = vmax.f32 %v33, %v34
  %v36 = vrot.slane %v35, 2
  %v37 = vmax.f32 %v35, %v36
  %v38 = vrot.slane %v37, 1
  %v39 = vmax.f32 %v37, %v38
  %v40 = vsub.f32 1.0, %v32
  %v41 = vsub.f32 1.0, %v39
  %v42 = vsel %vm25, %v13, -inf
  %v43 = vrot.slane %v42, 4
  %v44 = vmax.f32 %v42, %v43
  %v45 = vrot.slane %v44, 2
  %v46 = vmax.f32 %v44, %v45
  %v47 = vrot.slane %v46, 1
  %v48 = vmax.f32 %v46, %v47
  %v49 = vsel %vm25, %v14, -inf
  %v50 = vrot.slane %v49, 4
  %v51 = vmax.f32 %v49, %v50
  %v52 = vrot.slane %v51, 2
  %v53 = vmax.f32 %v51, %v52
  %v54 = vrot.slane %v53, 1
  %v55 = vmax.f32 %v53, %v54
  %v56 = vsub.f32 %v13, %v48
  %v57 = vsub.f32 %v14, %v55
  %v58 = vmul.f32 %v56, 1.442695
  %v59 = vpow.pop %v58
  %v60 = vmul.f32 %v57, 1.442695
  %v61 = vpow.pop %v60
  %v62 = vsel %vm25, %v59, 0.0
  %v63 = vrot.slane %v62, 4
  %v64 = vadd.f32 %v62, %v63
  %v65 = vrot.slane %v64, 2
  %v66 = vadd.f32 %v64, %v65
  %v67 = vrot.slane %v66, 1
  %v68 = vadd.f32 %v66, %v67
  %v69 = vsel %vm25, %v61, 0.0
  %v70 = vrot.slane %v69, 4
  %v71 = vadd.f32 %v69, %v70
  %v72 = vrot.slane %v71, 2
  %v73 = vadd.f32 %v71, %v72
  %v74 = vrot.slane %v73, 1
  %v75 = vadd.f32 %v73, %v74
  %v76 = vlog2.pop %v68
  %v77 = vmul.f32 %v76, 0.6931472
  %v78 = vlog2.pop %v75
  %v79 = vmul.f32 %v78, 0.6931472
  %v80 = vsub.f32 %v56, %v77
  %v81 = vsub.f32 %v57, %v79
  %v82 = vmul.f32 %v19, %v80
  %v83 = vmul.f32 %v20, %v81
  %v84 = vsel %vm25, %v82, 0.0
  %v85 = vrot.slane %v84, 4
  %v86 = vadd.f32 %v84, %v85
  %v87 = vrot.slane %v86, 2
  %v88 = vadd.f32 %v86, %v87
  %v89 = vrot.slane %v88, 1
  %v90 = vadd.f32 %v88, %v89
  %v91 = vsel %vm25, %v83, 0.0
  %v92 = vrot.slane %v91, 4
  %v93 = vadd.f32 %v91, %v92
  %v94 = vrot.slane %v93, 2
  %v95 = vadd.f32 %v93, %v94
  %v96 = vrot.slane %v95, 1
  %v97 = vadd.f32 %v95, %v96
  %v98 = vsub.f32 0.0, %v90
  %v99 = vsub.f32 0.0, %v97
  %v100 = vmul.f32 %v98, %v40
  %v101 = vmul.f32 %v99, %v41
  %vm104 = vcmask 1041409
  %v105 = vsel %vm104, %v101, %v100
  %vm107 = vcmask 1041408
  %v108 = vsel %vm107, %v105, 0.0
  %109 = vadd.xlane.f32.xlu0 %v108
  %v110 = vpop.xlane.xlu0 %109
  %vm111 = vcmask 1024
  %112 = vst.msk [vmem:[%s2] sm:$0x3] %vm111, %v110
  %v115 = vsel %vm104, %v41, %v40
  %v117 = vsel %vm107, %v115, 0.0
  %118 = vadd.xlane.f32.xlu0 %v117
  %v119 = vpop.xlane.xlu0 %118
  %120 = vst.msk [vmem:[%s3] sm:$0x3] %vm111, %v119
  // Predicated region
  $region10: #{combined_ce_loss.1} parent=0 // pred_check
    _
  $region11: #{combined_ce_loss.1} parent=0 // pred_check_branch
    %122 = sbr.rel (0) target = $region13
  $region12: #{combined_ce_loss.1} parent=0 // pred_region
    _
  $region13: #{combined_ce_loss.1} parent=0 // pred_fallthru
    _
  // Predicated region
  $region14: #{combined_ce_loss.1} parent=0 // pred_check
    _
  $region15: #{combined_ce_loss.1} parent=0 // pred_check_branch
    %124 = sbr.rel (0) target = $region17
  $region16: #{combined_ce_loss.1} parent=0 // pred_region
    _
  $region17: #{combined_ce_loss.1} parent=0 // pred_fallthru
    _
  // Predicated region
  $region18: #{combined_ce_loss.1} parent=0 // pred_check
    _
  $region19: #{combined_ce_loss.1} parent=0 // pred_check_branch
    %126 = sbr.rel (0) target = $region21
  $region20: #{combined_ce_loss.1} parent=0 // pred_region
    _
  $region21: #{combined_ce_loss.1} parent=0 // pred_fallthru
    _
  // Predicated region
  $region22: #{combined_ce_loss.1} parent=0 // pred_check
    _
  $region23: #{combined_ce_loss.1} parent=0 // pred_check_branch
    %128 = sbr.rel (0) target = $region25
  $region24: #{combined_ce_loss.1} parent=0 // pred_region
    _
  $region25: #{combined_ce_loss.1} parent=0 // pred_fallthru
    _

</llo_original>
